<compile_context>
chip_gen: v6e
topology: v6e:2x2x1
jax: 0.10.0
libtpu: 0.0.40
codegen_flags: <defaults>
</compile_context>

<pallas_src>
import functools

import jax
import jax.numpy as jnp
from jax import lax
from jax.experimental import pallas as pl
from jax.experimental.pallas import tpu as pltpu


# ----------------------------------------------------------------------------
# helpers
# ----------------------------------------------------------------------------
def _pick_tile(dim, pref, mult):
    """Largest tile <= pref that divides dim and is a multiple of `mult`;
    falls back to the full dim (always legal: equals the array dim)."""
    if dim <= pref:
        return dim
    t = (pref // mult) * mult
    while t >= mult:
        if dim % t == 0:
            return t
        t -= mult
    return dim


# ----------------------------------------------------------------------------
# Kernel 1: tiled dense projection  Y = X @ W (+ b)
# ----------------------------------------------------------------------------
def _linear_kernel(*refs, n_k, has_bias):
    if has_bias:
        x_ref, w_ref, b_ref, o_ref, acc_ref = refs
    else:
        x_ref, w_ref, o_ref, acc_ref = refs
        b_ref = None
    kk = pl.program_id(2)

    @pl.when(kk == 0)
    def _():
        acc_ref[...] = jnp.zeros_like(acc_ref)

    # bf16 MXU operands, f32 accumulation.
    acc_ref[...] += jnp.dot(
        x_ref[...].astype(jnp.bfloat16),
        w_ref[...].astype(jnp.bfloat16),
        preferred_element_type=jnp.float32,
    )

    @pl.when(kk == n_k - 1)
    def _():
        r = acc_ref[...]
        if has_bias:
            r = r + b_ref[...]          # (1, tn) broadcasts over (tm, tn)
        o_ref[...] = r.astype(o_ref.dtype)


def linear(x2d, w, bias=None, out_dtype=jnp.float32):
    """x2d: (M, K), w: (K, Nout), bias: (Nout,) or None -> (M, Nout)."""
    M, K = x2d.shape
    _, Nout = w.shape
    tm = _pick_tile(M, 256, 8)
    tk = _pick_tile(K, 512, 128)
    tn = _pick_tile(Nout, 512, 128)
    n_k = K // tk
    grid = (M // tm, Nout // tn, n_k)

    in_specs = [
        pl.BlockSpec((tm, tk), lambda i, j, kk: (i, kk)),
        pl.BlockSpec((tk, tn), lambda i, j, kk: (kk, j)),
    ]
    operands = [x2d, w]
    if bias is not None:
        in_specs.append(pl.BlockSpec((1, tn), lambda i, j, kk: (0, j)))
        operands.append(bias.reshape(1, Nout))

    kernel = functools.partial(_linear_kernel, n_k=n_k, has_bias=bias is not None)
    return pl.pallas_call(
        kernel,
        out_shape=jax.ShapeDtypeStruct((M, Nout), out_dtype),
        grid=grid,
        in_specs=in_specs,
        out_specs=pl.BlockSpec((tm, tn), lambda i, j, kk: (i, j)),
        scratch_shapes=[pltpu.VMEM((tm, tn), jnp.float32)],
        compiler_params=pltpu.CompilerParams(
            dimension_semantics=("parallel", "parallel", "arbitrary")
        ),
    )(*operands)


# ----------------------------------------------------------------------------
# Kernel 2: attention core.  Grid = (B, q_tiles, H); H innermost reduction
# axis for the head-averaged attention accumulator.
# ----------------------------------------------------------------------------
def _attention_kernel(*refs, heads, has_mask, has_bias, mask_value):
    i = 0
    q_ref = refs[i]; i += 1
    k_ref = refs[i]; i += 1
    v_ref = refs[i]; i += 1
    mask_ref = None
    bias_ref = None
    if has_mask:
        mask_ref = refs[i]; i += 1
    if has_bias:
        bias_ref = refs[i]; i += 1
    out_ref, attn_ref = refs[i], refs[i + 1]

    hi = pl.program_id(2)

    q = q_ref[0, 0]                      # (tq, Dh) bf16 (scale already folded)
    k = k_ref[0, 0]                      # (N,  Dh) bf16
    v = v_ref[0, 0]                      # (N,  Dh) bf16

    # q @ k^T contracting the last dims of both operands: no transpose
    # materialized; bf16 MXU operands, f32 accumulation.
    dots = lax.dot_general(
        q, k, (((1,), (1,)), ((), ())),
        preferred_element_type=jnp.float32,
    )                                    # (tq, N) f32

    if has_bias:
        dots = dots + bias_ref[0, 0]
    if has_mask:
        # Mask applied after the bias add with a large-but-finite value so
        # no -inf/NaN can appear; softmax of masked positions is still 0.
        dots = jnp.where(mask_ref[0, 0] > 0, mask_value, dots)

    # softmax(dim=-1), f32 on the VPU/EUP.
    dots = dots - jnp.max(dots, axis=-1, keepdims=True)
    p = jnp.exp(dots)
    inv = pl.reciprocal(jnp.sum(p, axis=-1, keepdims=True), approx=True)
    attn = p * inv                       # (tq, N) f32

    out = jnp.dot(attn.astype(v.dtype), v, preferred_element_type=jnp.float32)
    out_ref[0, 0] = out.astype(out_ref.dtype)

    # Accumulate the head-averaged attention map in the resident output block.
    contrib = (attn * (1.0 / heads))[None, :, :]

    @pl.when(hi == 0)
    def _():
        attn_ref[...] = contrib

    @pl.when(hi > 0)
    def _():
        attn_ref[...] = attn_ref[...] + contrib


def attention_core(q, k, v, mask_b1nn, bias_bhnn, heads):
    """q,k,v: (B, H, N, Dh) bf16; mask: (B,1,N,N) f32 0/1 or None;
    bias: (B,H,N,N) f32 or None.  Returns (out (B,H,N,Dh) bf16,
    attn_avg (B,N,N) f32)."""
    B, H, N, Dh = q.shape
    tq = _pick_tile(N, 256, 8)
    nq = N // tq
    has_mask = mask_b1nn is not None
    has_bias = bias_bhnn is not None

    in_specs = [
        pl.BlockSpec((1, 1, tq, Dh), lambda bi, qi, hi: (bi, hi, qi, 0)),  # q
        pl.BlockSpec((1, 1, N, Dh), lambda bi, qi, hi: (bi, hi, 0, 0)),    # k
        pl.BlockSpec((1, 1, N, Dh), lambda bi, qi, hi: (bi, hi, 0, 0)),    # v
    ]
    operands = [q, k, v]
    if has_mask:
        in_specs.append(
            pl.BlockSpec((1, 1, tq, N), lambda bi, qi, hi: (bi, 0, qi, 0)))
        operands.append(mask_b1nn)
    if has_bias:
        in_specs.append(
            pl.BlockSpec((1, 1, tq, N), lambda bi, qi, hi: (bi, hi, qi, 0)))
        operands.append(bias_bhnn)

    kernel = functools.partial(
        _attention_kernel,
        heads=heads, has_mask=has_mask, has_bias=has_bias, mask_value=-1e30,
    )

    out, attn_avg = pl.pallas_call(
        kernel,
        out_shape=(
            jax.ShapeDtypeStruct((B, H, N, Dh), jnp.bfloat16),
            jax.ShapeDtypeStruct((B, N, N), jnp.float32),
        ),
        grid=(B, nq, H),
        in_specs=in_specs,
        out_specs=(
            pl.BlockSpec((1, 1, tq, Dh), lambda bi, qi, hi: (bi, hi, qi, 0)),
            # same block index across the head axis -> VMEM-resident accumulator
            pl.BlockSpec((1, tq, N), lambda bi, qi, hi: (bi, qi, 0)),
        ),
        compiler_params=pltpu.CompilerParams(
            dimension_semantics=("parallel", "parallel", "arbitrary")
        ),
    )(*operands)
    return out, attn_avg


# ----------------------------------------------------------------------------
# Full module forward
# ----------------------------------------------------------------------------
def attention_forward(params, x, padding_mask=None, positions_bias=None,
                      causal_mask=None):
    """x: (B, N, DIM) float32.  Returns (out (B,N,DIM) f32, attn_avg (B,N,N) f32)."""
    B, N, DIM = x.shape
    H = params["heads"]
    Dh = params["dim_head"]
    inner = H * Dh
    scale = Dh ** (-0.5)

    # Fold the q scale into the qkv weight (one (DIM, inner) multiply, not a
    # per-step (N, Dh) elementwise scale in the kernel).
    w_qkv = params["w_qkv"].at[:, :inner].multiply(scale)

    # --- to_qkv (Linear, no bias), bf16 output --------------------------------
    x2d = x.reshape(B * N, DIM)
    qkv = linear(x2d, w_qkv, bias=None, out_dtype=jnp.bfloat16)   # (B*N, 3*inner)
    qkv = qkv.reshape(B, N, 3, H, Dh).transpose(2, 0, 3, 1, 4)    # (3, B, H, N, Dh)
    q, k, v = qkv[0], qkv[1], qkv[2]

    # --- optional mask / bias: only built (and only DMA'd) when provided -----
    mask = None
    if padding_mask is not None:   # (B, N) bool -> broadcast over query rows
        pm = padding_mask.astype(jnp.float32)[:, None, None, :]
        mask = jnp.broadcast_to(pm, (B, 1, N, N))
    if causal_mask is not None:    # broadcastable to (B, 1, N, N)
        cm = jnp.broadcast_to(causal_mask.astype(jnp.float32), (B, 1, N, N))
        mask = cm if mask is None else jnp.maximum(mask, cm)
        # TODO(synk): standard lower-triangular causal masks could be generated
        # in-kernel from broadcasted_iota instead of DMAing an (B,1,N,N) array.
    bias = None
    if positions_bias is not None:
        bias = jnp.broadcast_to(
            positions_bias.astype(jnp.float32), (B, H, N, N))

    # --- attention core (head-averaged attention accumulated in-kernel) ------
    out_bhnd, attn_avg = attention_core(q, k, v, mask, bias, H)

    # --- merge heads + to_out (Linear with bias) ------------------------------
    out_merged = out_bhnd.transpose(0, 2, 1, 3).reshape(B * N, inner)
    out = linear(out_merged, params["w_out"], bias=params["b_out"],
                 out_dtype=jnp.float32).reshape(B, N, DIM)
    return out, attn_avg


# ----------------------------------------------------------------------------
# Pure-JAX f32 reference (mirrors the PyTorch module)
# ----------------------------------------------------------------------------
def attention_forward_ref(params, x, padding_mask=None, positions_bias=None,
                          causal_mask=None):
    B, N, DIM = x.shape
    H, Dh = params["heads"], params["dim_head"]
    inner = H * Dh
    scale = Dh ** (-0.5)
    qkv = x @ params["w_qkv"]
    q, k, v = jnp.split(qkv, 3, axis=-1)

    def to_heads(t):
        return t.reshape(B, N, H, Dh).transpose(0, 2, 1, 3)

    q, k, v = to_heads(q), to_heads(k), to_heads(v)
    q = q * scale
    dots = jnp.einsum("bhid,bhjd->bhij", q, k)
    mask_value = -jnp.finfo(dots.dtype).max
    if padding_mask is not None:
        dots = jnp.where(padding_mask[:, None, None, :], mask_value, dots)
    if causal_mask is not None:
        dots = jnp.where(causal_mask, mask_value, dots)
    if positions_bias is not None:
        dots = dots + positions_bias
    attn = jax.nn.softmax(dots, axis=-1)
    out = jnp.einsum("bhij,bhjd->bhid", attn, v)
    out = out.transpose(0, 2, 1, 3).reshape(B, N, inner)
    out = out @ params["w_out"] + params["b_out"]
    return out, attn.sum(axis=1) / H


if __name__ == "__main__":
    # Small shapes consistent with the module.
    B, N, DIM = 2, 8, 32
    HEADS, DIM_HEAD = 2, 8
    INNER = HEADS * DIM_HEAD

    key = jax.random.PRNGKey(0)
    k_x, k_wqkv, k_wout, k_bout, k_bias = jax.random.split(key, 5)

    params = {
        "heads": HEADS,
        "dim_head": DIM_HEAD,
        # stored already-transposed: y = x @ W  (torch Linear does x @ W.T)
        "w_qkv": jax.random.normal(k_wqkv, (DIM, 3 * INNER), jnp.float32) * 0.05,
        "w_out": jax.random.normal(k_wout, (INNER, DIM), jnp.float32) * 0.05,
        "b_out": jax.random.normal(k_bout, (DIM,), jnp.float32) * 0.05,
    }
    x = jax.random.normal(k_x, (B, N, DIM), jnp.float32)

    # bf16 MXU operands vs f32 reference -> loosened tolerance.
    TOL = dict(atol=2e-2, rtol=2e-2)

    # --- path 1: no masks, no positions bias ---------------------------------
    out, attn_avg = attention_forward(params, x)
    jax.block_until_ready((out, attn_avg))
    out_ref, attn_ref = attention_forward_ref(params, x)
    assert out.shape == (B, N, DIM) and attn_avg.shape == (B, N, N)
    assert jnp.allclose(out, out_ref, **TOL)
    assert jnp.allclose(attn_avg, attn_ref, **TOL)

    # --- path 2: padding mask + causal mask + positions bias -----------------
    padding_mask = jnp.zeros((B, N), jnp.bool_).at[0, -1].set(True)
    causal_mask = jnp.triu(jnp.ones((N, N), jnp.bool_), k=1)[None, None]
    positions_bias = jax.random.normal(k_bias, (1, HEADS, N, N), jnp.float32) * 0.1

    out2, attn2 = attention_forward(params, x, padding_mask, positions_bias,
                                    causal_mask)
    jax.block_until_ready((out2, attn2))
    out2_ref, attn2_ref = attention_forward_ref(params, x, padding_mask,
                                                positions_bias, causal_mask)
    assert jnp.allclose(out2, out2_ref, **TOL)
    assert jnp.allclose(attn2, attn2_ref, **TOL)

    # TODO(synk): `stable_softmax` (stable=True path) not implemented; the
    # default stable=False path is reproduced.
    print("KERNEL_OK")
</pallas_src>

<mosaic_0001>
module attributes {stable_mosaic.version = 11 : i64} {
  func.func @_linear_kernel(%arg0: i32, %arg1: i32, %arg2: i32, %arg3: memref<16x32xf32, #tpu.memory_space<vmem>>, %arg4: memref<32x48xf32, #tpu.memory_space<vmem>>, %arg5: memref<16x48xbf16, #tpu.memory_space<vmem>>, %arg6: memref<16x48xf32, #tpu.memory_space<vmem>>) attributes {dimension_semantics = [#tpu.dimension_semantics<parallel>, #tpu.dimension_semantics<parallel>, #tpu.dimension_semantics<arbitrary>], iteration_bounds = array<i64: 1, 1, 1>, scalar_prefetch = 0 : i64, scratch_operands = 1 : i64, tpu.core_type = #tpu.core_type<tc>, window_params = [{transform_indices = @transform_0, window_bounds = array<i64: 16, 32>}, {transform_indices = @transform_1, window_bounds = array<i64: 32, 48>}, {transform_indices = @transform_2, window_bounds = array<i64: 16, 48>}]} {
    %c0_i32 = arith.constant 0 : i32
    %0 = arith.cmpi eq, %arg2, %c0_i32 : i32
    %1 = arith.extui %0 : i1 to i32
    %c0_i32_0 = arith.constant 0 : i32
    %2 = arith.cmpi ne, %1, %c0_i32_0 : i32
    scf.if %2 {
      %cst_10 = arith.constant 0.000000e+00 : f32
      %14 = vector.broadcast %cst_10 : f32 to vector<16x48xf32>
      %c0_11 = arith.constant 0 : index
      %c0_12 = arith.constant 0 : index
      %15 = vector.load %arg6[%c0_11, %c0_12] : memref<16x48xf32, #tpu.memory_space<vmem>>, vector<16x48xf32>
      tpu.vector_store %arg6[%c0_11, %c0_12], %14 {strides = array<i32>} : memref<16x48xf32, #tpu.memory_space<vmem>>, vector<16x48xf32>,
    } else {
    }
    %c0 = arith.constant 0 : index
    %c0_1 = arith.constant 0 : index
    %3 = vector.load %arg6[%c0, %c0_1] : memref<16x48xf32, #tpu.memory_space<vmem>>, vector<16x48xf32>
    %c0_2 = arith.constant 0 : index
    %c0_3 = arith.constant 0 : index
    %4 = vector.load %arg3[%c0_2, %c0_3] : memref<16x32xf32, #tpu.memory_space<vmem>>, vector<16x32xf32>
    %5 = arith.truncf %4 : vector<16x32xf32> to vector<16x32xbf16>
    %c0_4 = arith.constant 0 : index
    %c0_5 = arith.constant 0 : index
    %6 = vector.load %arg4[%c0_4, %c0_5] : memref<32x48xf32, #tpu.memory_space<vmem>>, vector<32x48xf32>
    %7 = arith.truncf %6 : vector<32x48xf32> to vector<32x48xbf16>
    %cst = arith.constant dense<0.000000e+00> : vector<16x48xf32>
    %8 = tpu.matmul %5, %7, %cst {dimension_numbers = #tpu.dot_dimension_numbers<[1], [0], [0], [1], [0, 0, 1, 1], [], []>} : vector<16x32xbf16>, vector<32x48xbf16>, vector<16x48xf32> -> vector<16x48xf32>
    %9 = arith.addf %3, %8 : vector<16x48xf32>
    %c0_6 = arith.constant 0 : index
    %c0_7 = arith.constant 0 : index
    %10 = vector.load %arg6[%c0_6, %c0_7] : memref<16x48xf32, #tpu.memory_space<vmem>>, vector<16x48xf32>
    tpu.vector_store %arg6[%c0_6, %c0_7], %9 {strides = array<i32>} : memref<16x48xf32, #tpu.memory_space<vmem>>, vector<16x48xf32>,
    %c0_i32_8 = arith.constant 0 : i32
    %11 = arith.cmpi eq, %arg2, %c0_i32_8 : i32
    %12 = arith.extui %11 : i1 to i32
    %c0_i32_9 = arith.constant 0 : i32
    %13 = arith.cmpi ne, %12, %c0_i32_9 : i32
    scf.if %13 {
      %c0_10 = arith.constant 0 : index
      %c0_11 = arith.constant 0 : index
      %14 = vector.load %arg6[%c0_10, %c0_11] : memref<16x48xf32, #tpu.memory_space<vmem>>, vector<16x48xf32>
      %15 = arith.truncf %14 : vector<16x48xf32> to vector<16x48xbf16>
      %c0_12 = arith.constant 0 : index
      %c0_13 = arith.constant 0 : index
      %16 = vector.load %arg5[%c0_12, %c0_13] : memref<16x48xbf16, #tpu.memory_space<vmem>>, vector<16x48xbf16>
      tpu.vector_store %arg5[%c0_12, %c0_13], %15 {strides = array<i32>} : memref<16x48xbf16, #tpu.memory_space<vmem>>, vector<16x48xbf16>,
    } else {
    }
    return
  }
  func.func @transform_0(%arg0: i32, %arg1: i32, %arg2: i32) -> (i32, i32) {
    %c0_i32 = arith.constant 0 : i32
    return %arg0, %arg2 : i32, i32
  }
  func.func @transform_1(%arg0: i32, %arg1: i32, %arg2: i32) -> (i32, i32) {
    %c0_i32 = arith.constant 0 : i32
    return %arg2, %arg1 : i32, i32
  }
  func.func @transform_2(%arg0: i32, %arg1: i32, %arg2: i32) -> (i32, i32) {
    %c0_i32 = arith.constant 0 : i32
    return %arg0, %arg1 : i32, i32
  }
}

</mosaic_0001>

<llo_original>
// kernel: tpu_custom_call.1
$region0: #{tpu_custom_call.1}
  #allocation0 [shape = 'u32[]', space=smem, size = 0x4, offset = 0x4, fixed_abs, tag = 'smem constant byte address 0x4 - core index']
  #allocation1 [shape = 'u32[144,128]{1,0:T(1,128)}', space=vmem, size = 0x12000, scoped, tag = 'internal scratch']
  #allocation2 [shape = 'f32[16,48]{1,0:T(8,128)}', space=vmem, size = 0x2000, scoped, tag = 'scratch operand']
  %s0 = inlined_call_operand.hbm [shape: f32[16,32], index: 0, kind: input, shape index: {}]
  %s1 = inlined_call_operand.hbm [shape: f32[32,48], index: 1, kind: input, shape index: {}]
  %s2 = inlined_call_operand.hbm [shape: bf16[16,48], index: 2, kind: output, shape index: {}]
  %s3 = sld [smem:[#allocation0]]
  $region34: #{tpu_custom_call.1} parent=0
    _
  %s5 = ssub.s32 1, %s3
  %s6 = scalar_select 0, %s5, %s3
  $region1: #{tpu_custom_call.1} parent=0
    #allocation3 [shape = 'u8[8192]{0}', space=vmem, size = 0x2000, scoped, tag = 'input window, operand 0, single buffered']
    #allocation4 [shape = 's32[1]{0}', space=sflag, size = 0x4, scoped, tag = 'scoped memory for tpu_custom_call.1']
    #allocation5 [shape = 's32[1]{0}', space=sflag, size = 0x4, scoped, tag = 'scoped memory for tpu_custom_call.1']
    #allocation6 [shape = 'u8[16384]{0}', space=vmem, size = 0x4000, scoped, tag = 'input window, operand 1, single buffered']
    #allocation7 [shape = 's32[1]{0}', space=sflag, size = 0x4, scoped, tag = 'scoped memory for tpu_custom_call.1']
    #allocation8 [shape = 'u8[4096]{0}', space=vmem, size = 0x1000, scoped, tag = 'output window, operand 0, single buffered']
    %7 = vsyncpa [#allocation4], 0
    %8 = vsyncpa [#allocation7], 0
    %9 = vsyncpa [#allocation5], 0
    // Predicated region
    $region2: #{tpu_custom_call.1} parent=1 // pred_check
      _
    $region3: #{tpu_custom_call.1} parent=1 // pred_check_branch
      %11 = sbr.rel (0) target = $region5
    $region4: #{tpu_custom_call.1} parent=1 // pred_region
      %s13 = ssub.s32 256, 256
      %14 = vsyncadd [#allocation4], %s13
      %s15 = sshll.u32 [#allocation3], 4
      %s16 = int_to_ptr.vmem [resolvable:$true] %s15
      %21 = dma.hbm_to_vmem [thread:$0]  %s0, 256, %s16, [#allocation4], 128, 128, 8
    $region5: #{tpu_custom_call.1} parent=1 // pred_fallthru
      _
    // Predicated region
    $region6: #{tpu_custom_call.1} parent=1 // pred_check
      _
    $region7: #{tpu_custom_call.1} parent=1 // pred_check_branch
      %23 = sbr.rel (0) target = $region9
    $region8: #{tpu_custom_call.1} parent=1 // pred_region
      %s25 = ssub.s32 512, 512
      %26 = vsyncadd [#allocation7], %s25
      %s27 = sshll.u32 [#allocation6], 4
      %s28 = int_to_ptr.vmem [resolvable:$true] %s27
      %33 = dma.hbm_to_vmem [thread:$0]  %s1, 512, %s28, [#allocation7], 128, 128, 8
    $region9: #{tpu_custom_call.1} parent=1 // pred_fallthru
      _
    // Predicated region
    $region10: #{tpu_custom_call.1} parent=1 // pred_check
      _
    $region11: #{tpu_custom_call.1} parent=1 // pred_check_branch
      %35 = sbr.rel (0) target = $region13
    $region12: #{tpu_custom_call.1} parent=1 // pred_region
      %36 = dma.done [#allocation4], 256
    $region13: #{tpu_custom_call.1} parent=1 // pred_fallthru
      _
    // Predicated region
    $region14: #{tpu_custom_call.1} parent=1 // pred_check
      _
    $region15: #{tpu_custom_call.1} parent=1 // pred_check_branch
      %38 = sbr.rel (0) target = $region17
    $region16: #{tpu_custom_call.1} parent=1 // pred_region
      %39 = dma.done [#allocation7], 512
    $region17: #{tpu_custom_call.1} parent=1 // pred_fallthru
      _
    %p41 = scmp.eq.s32.totalorder 0, 0
    // Predicated region
    $region18: #{tpu_custom_call.1} parent=1 // pred_check
      %p42 = pneg %p41
    $region19: #{tpu_custom_call.1} parent=1 // pred_check_branch
      %44 = sbr.rel (%p42) target = $region21
    $region20: #{tpu_custom_call.1} parent=1 // pred_region
      %vm45 = vcmask 392192
      %46 = vst.msk [vmem:[#allocation2] sm:$0xff] %vm45, 0.0
      %47 = vst.msk [vmem:[#allocation2 + $0x8] sm:$0xff] %vm45, 0.0
    $region21: #{tpu_custom_call.1} parent=1 // pred_fallthru
      _
    %v48 = vld [vmem:[#allocation2] sm:$0xff]
    %v49 = vld [vmem:[#allocation2 + $0x8] sm:$0xff]
    %v50 = vld [vmem:[#allocation3] sm:$0xff]
    %v51 = vld [vmem:[#allocation3 + $0x8] sm:$0xff]
    %v52 = vpack.c.bf16 %v51, %v50
    %v53 = vld [vmem:[#allocation6] sm:$0xff]
    %v54 = vld [vmem:[#allocation6 + $0x8] sm:$0xff]
    %v55 = vld [vmem:[#allocation6 + $0x10] sm:$0xff]
    %v56 = vld [vmem:[#allocation6 + $0x18] sm:$0xff]
    %v57 = vpack.c.bf16 %v54, %v53
    %v58 = vpack.c.bf16 %v56, %v55
    %vm59 = vcmask 261120
    %v61 = vsel %vm59, %v52, 0
    %63 = vmatprep.subr.bf16.mxu0 0
    %64 = vmatpush1.bf16.msra.mxu0 0
    %65 = vmatprep.subr.bf16.mxu0 0
    %66 = vmatpush1.bf16.msra.mxu0 0
    %67 = vmatprep.subr.bf16.mxu0 0
    %68 = vmatpush1.bf16.msra.mxu0 0
    %69 = vmatprep.subr.bf16.mxu0 0
    %70 = vmatpush1.bf16.msra.mxu0 0
    %71 = vmatprep.subr.bf16.mxu0 0
    %72 = vmatpush1.bf16.msra.mxu0 0
    %73 = vmatprep.subr.bf16.mxu0 0
    %74 = vmatpush1.bf16.msra.mxu0 0
    %75 = vmatprep.subr.bf16.mxu0 0
    %76 = vmatpush1.bf16.msra.mxu0 %v58
    %77 = vmatprep.subr.bf16.mxu0 0
    %78 = vmatpush1.bf16.msra.mxu0 %v57
    %79 = vmatprep.subr.bf16.mxu0 0
    %80 = vmatpush2.bf16.msra.mxu0 0
    %81 = vmatprep.subr.bf16.mxu0 0
    %82 = vmatpush2.bf16.msra.mxu0 0
    %83 = vmatprep.subr.bf16.mxu0 0
    %84 = vmatpush2.bf16.msra.mxu0 0
    %85 = vmatprep.subr.bf16.mxu0 0
    %86 = vmatpush2.bf16.msra.mxu0 0
    %87 = vmatprep.subr.bf16.mxu0 0
    %88 = vmatpush2.bf16.msra.mxu0 0
    %89 = vmatprep.subr.bf16.mxu0 0
    %90 = vmatpush2.bf16.msra.mxu0 0
    %91 = vmatprep.subr.bf16.mxu0 0
    %92 = vmatpush2.bf16.msra.mxu0 0
    %93 = vmatprep.subr.bf16.mxu0 0
    %94 = vmatpush2.bf16.msra.mxu0 0
    %95 = vmatprep.mubr.bf16.mxu0 0
    %96 = vmatmul.mubr.bf16.gmra.mxu0 %v61
    %v97 = vpop.f32.mrf.mxu0
    %v98 = vadd.f32 0.0, %v97
    %v99 = vpop.f32.mrf.mxu0
    %v100 = vpop.f32.mrf.mxu0
    %v101 = vadd.f32 0.0, %v100
    %v102 = vpop.f32.mrf.mxu0
    %103 = vdwg.mxu0
    %v104 = vadd.f32 %v48, %v98
    %v105 = vadd.f32 %v49, %v101
    %vm106 = vcmask 392192
    %107 = vst.msk [vmem:[#allocation2] sm:$0xff] %vm106, %v104
    %108 = vst.msk [vmem:[#allocation2 + $0x8] sm:$0xff] %vm106, %v105
    // Predicated region
    $region22: #{tpu_custom_call.1} parent=1 // pred_check
      %p109 = pneg %p41
    $region23: #{tpu_custom_call.1} parent=1 // pred_check_branch
      %111 = sbr.rel (%p109) target = $region25
    $region24: #{tpu_custom_call.1} parent=1 // pred_region
      %v112 = vld [vmem:[#allocation2] sm:$0xff]
      %v113 = vld [vmem:[#allocation2 + $0x8] sm:$0xff]
      %v114 = vpack.c.bf16 %v113, %v112
      %v116 = vunpack.c.l.b16 %v114
      %v117 = vunpack.c.h.b16 %v114
      %v118 = vpack.c.b16 %v116, %v116
      %v119 = vpack.c.b16 %v117, %v117
      %vm122 = vcmask 388096
      %123 = vst.msk [vmem:[#allocation8] sm:$0xf] %vm122, %v118
      %124 = vst.msk [vmem:[#allocation8 + $0x4] sm:$0xf] %vm122, %v119
    $region25: #{tpu_custom_call.1} parent=1 // pred_fallthru
      _
    // Predicated region
    $region26: #{tpu_custom_call.1} parent=1 // pred_check
      _
    $region27: #{tpu_custom_call.1} parent=1 // pred_check_branch
      %126 = sbr.rel (0) target = $region29
    $region28: #{tpu_custom_call.1} parent=1 // pred_region
      %s128 = ssub.s32 128, 128
      %129 = vsyncadd [#allocation5], %s128
      %s130 = sshll.u32 [#allocation8], 4
      %s131 = int_to_ptr.vmem [resolvable:$true] %s130
      %136 = dma.vmem_to_hbm [thread:$0]  %s131, 128, %s2, [#allocation5], 64, 64, 4
    $region29: #{tpu_custom_call.1} parent=1 // pred_fallthru
      _
    // Predicated region
    $region30: #{tpu_custom_call.1} parent=1 // pred_check
      _
    $region31: #{tpu_custom_call.1} parent=1 // pred_check_branch
      %138 = sbr.rel (0) target = $region33
    $region32: #{tpu_custom_call.1} parent=1 // pred_region
      %139 = dma.done [#allocation5], 128
    $region33: #{tpu_custom_call.1} parent=1 // pred_fallthru
      _
    %140 = vsyncpa [#allocation4], 1
    %141 = vsyncpa [#allocation7], 1
    %142 = vsyncpa [#allocation5], 1

</llo_original>
